<compile_context>
chip_gen: v6e
topology: v6e:2x2x1
jax: 0.10.0
libtpu: 0.0.40
codegen_flags: <defaults>
</compile_context>

<pallas_src>
import functools

import jax
import jax.numpy as jnp
from jax import lax
from jax.experimental import pallas as pl
from jax.experimental.pallas import tpu as pltpu


def _round_up(x, m):
    return (x + m - 1) // m * m


def _hw_params():
    """(vmem_limit_bytes, multi_tc) from a trace-time hardware query, with safe defaults."""
    vmem_bytes = 128 * 1024 * 1024
    try:
        info = pltpu.get_tpu_info()
        vmem_bytes = int(getattr(info, "vmem_capacity_bytes", vmem_bytes))
    except Exception:
        pass
    multi_tc = vmem_bytes <= 64 * 1024 * 1024      # v7x-like: 64 MiB VMEM, 2 TCs/chip
    vmem_limit = 32 * 1024 * 1024 if multi_tc else 64 * 1024 * 1024
    return vmem_limit, multi_tc


def _pick_batch_block(n, lp, cp, io_cap_bytes, multi_tc):
    """Batch elements per grid step.

    Targets enough matmul rows to fill the MXU / amortize per-step overhead, caps the
    double-buffered bf16 in/out block VMEM at io_cap_bytes, and (only on 2-TC parts)
    keeps the parallel grid extent >= 2 so both TensorCores get work.
    """
    target_rows = 512 if multi_tc else 1024
    nb = max(1, target_rows // lp)
    # double-buffered bf16 input + output blocks: 2 arrays * 2 buffers * nb*lp*cp * 2 B
    nb = min(nb, max(1, io_cap_bytes // (8 * cp * lp)))
    nb = min(nb, n)
    if multi_tc and n >= 2:
        nb = min(nb, -(-n // 2))    # >= 2 parallel grid steps for the 2 TensorCores
    return max(nb, 1)


def _basic_block_kernel(x_ref, w1_ref, s1_ref, b1_ref, w2_ref, s2_ref, b2_ref, o_ref,
                        *, lp, l_valid, cp):
    """One batch-block per grid step, flattened to 2-D rows.

    x_ref : (M, Cp)     bf16 input rows (M = NB * Lp, channels-last, lane-dense Cp)
    wK_ref: (3*Cp, Cp)  bf16 fused conv-K weights (tap k occupies rows [k*Cp, (k+1)*Cp))
    sK/bK : (1, Cp)     f32 folded BatchNorm scale / bias
    o_ref : (M, Cp)     bf16 output rows
    """
    M = x_ref.shape[0]

    x = x_ref[...].astype(jnp.float32)                       # (M, Cp) f32 working copy

    # In-kernel boundary masks (no HBM traffic): zero each sequence's left tap on its
    # first row and its right tap on its last *valid* row (rows >= l_valid are padding
    # whose outputs get sliced off, but they must not leak into valid rows).
    row = lax.broadcasted_iota(jnp.int32, (M, 1), 0) % lp
    not_first = row != 0
    not_last = row != (l_valid - 1)

    def conv3(src, w_ref):
        # k=3, padding=1 "same" conv as three accumulating (M,Cp)@(Cp,Cp) bf16 matmuls
        # (no (M,3Cp) im2col slab), f32 accumulation. left[i]=src[i-1], right[i]=src[i+1].
        zeros = jnp.zeros_like(src)
        left = jnp.where(not_first, pltpu.roll(src, shift=1, axis=0), zeros)
        right = jnp.where(not_last, pltpu.roll(src, shift=M - 1, axis=0), zeros)
        acc = jnp.dot(src.astype(jnp.bfloat16), w_ref[cp:2 * cp, :],
                      preferred_element_type=jnp.float32)
        acc = acc + jnp.dot(left.astype(jnp.bfloat16), w_ref[0:cp, :],
                            preferred_element_type=jnp.float32)
        acc = acc + jnp.dot(right.astype(jnp.bfloat16), w_ref[2 * cp:3 * cp, :],
                            preferred_element_type=jnp.float32)
        return acc

    # conv1 -> bn1 -> relu   (dropout: identity in eval mode)
    y = conv3(x, w1_ref)
    y = jnp.maximum(y * s1_ref[...] + b1_ref[...], 0.0)

    # conv2 -> bn2   (activations stay in vregs; no VMEM round trip between the convs)
    y = conv3(y, w2_ref)
    y = y * s2_ref[...] + b2_ref[...]

    # residual add (stride=1, downsample=None -> identity is x) and final relu
    o_ref[...] = jnp.maximum(y + x, 0.0).astype(o_ref.dtype)


@functools.partial(jax.jit, static_argnames=("eps",))
def basic_block_1d(x_ncl, w1_oik, g1, b1, m1, v1, w2_oik, g2, b2, m2, v2, eps=1e-5):
    """PyTorch-layout entry point: x (N, C, L), conv weights (O, I, 3), BN params (C,).

    Only the stride=1 / downsample=None configuration is implemented.
    """
    N, C, L = x_ncl.shape
    Cp = _round_up(C, 128)          # lane-dense channels
    Lp = _round_up(L, 8)            # sublane-aligned length

    vmem_limit, multi_tc = _hw_params()
    NB = _pick_batch_block(N, Lp, Cp, vmem_limit // 4, multi_tc)
    Np = _round_up(N, NB)
    G = Np // NB
    M = NB * Lp                     # rows per grid step

    # ---- fold BatchNorm (inference) into per-channel scale/bias, pad channels ----
    def fold(g, bt, mn, vr):
        scale = g / jnp.sqrt(vr + eps)
        return scale, bt - mn * scale

    s1, bb1 = fold(g1, b1, m1, v1)
    s2, bb2 = fold(g2, b2, m2, v2)
    pad_c = (0, Cp - C)
    s1 = jnp.pad(s1, pad_c).reshape(1, Cp)
    bb1 = jnp.pad(bb1, pad_c).reshape(1, Cp)
    s2 = jnp.pad(s2, pad_c).reshape(1, Cp)
    bb2 = jnp.pad(bb2, pad_c).reshape(1, Cp)

    # ---- fuse the 3 conv taps into one (3*Cp, Cp) bf16 weight per conv ----
    def fuse_w(w_oik):
        w_kic = jnp.transpose(w_oik, (2, 1, 0))                     # (3, Cin, Cout)
        w_kic = jnp.pad(w_kic, ((0, 0), (0, Cp - C), (0, Cp - C)))  # zero-pad channels
        return w_kic.reshape(3 * Cp, Cp).astype(jnp.bfloat16)

    w1f = fuse_w(w1_oik)
    w2f = fuse_w(w2_oik)

    # ---- channels-last, pad (N, L, C) -> (Np, Lp, Cp), flatten to bf16 2-D rows ----
    x_nlc = jnp.transpose(x_ncl, (0, 2, 1))
    x_pad = jnp.pad(x_nlc, ((0, Np - N), (0, Lp - L), (0, Cp - C)))
    x2d = x_pad.reshape(Np * Lp, Cp).astype(jnp.bfloat16)

    kernel = functools.partial(_basic_block_kernel, lp=Lp, l_valid=L, cp=Cp)

    out2d = pl.pallas_call(
        kernel,
        out_shape=jax.ShapeDtypeStruct((Np * Lp, Cp), jnp.bfloat16),
        grid=(G,),
        in_specs=[
            pl.BlockSpec((M, Cp), lambda i: (i, 0)),        # x rows (bf16)
            pl.BlockSpec((3 * Cp, Cp), lambda i: (0, 0)),   # fused w1 (grid-invariant)
            pl.BlockSpec((1, Cp), lambda i: (0, 0)),        # bn1 scale
            pl.BlockSpec((1, Cp), lambda i: (0, 0)),        # bn1 bias
            pl.BlockSpec((3 * Cp, Cp), lambda i: (0, 0)),   # fused w2 (grid-invariant)
            pl.BlockSpec((1, Cp), lambda i: (0, 0)),        # bn2 scale
            pl.BlockSpec((1, Cp), lambda i: (0, 0)),        # bn2 bias
        ],
        out_specs=pl.BlockSpec((M, Cp), lambda i: (i, 0)),
        compiler_params=pltpu.CompilerParams(
            dimension_semantics=("parallel",),
            vmem_limit_bytes=vmem_limit),
    )(x2d, w1f, s1, bb1, w2f, s2, bb2)

    out = out2d.reshape(Np, Lp, Cp)[:N, :L, :C]
    return jnp.transpose(out, (0, 2, 1)).astype(x_ncl.dtype)


# ---------------- plain-JAX reference (PyTorch semantics, NCL layout) ----------------
def _reference_ncl(x_ncl, w1_oik, g1, b1, m1, v1, w2_oik, g2, b2, m2, v2, eps=1e-5,
                   conv_dtype=jnp.bfloat16, io_dtype=jnp.bfloat16):
    """io_dtype mimics the kernel's bf16 activation streams; conv_dtype its MXU operands."""
    x = x_ncl.astype(io_dtype).astype(jnp.float32)

    def conv(x_, w):  # x_: (N, C, L); w: (O, I, K)
        return lax.conv_general_dilated(
            x_.astype(conv_dtype), w.astype(conv_dtype),
            window_strides=(1,), padding=((1, 1),),
            dimension_numbers=("NCH", "OIH", "NCH"),
            preferred_element_type=jnp.float32)

    def bn(x_, g, b, m, v):
        return ((x_ - m[None, :, None]) / jnp.sqrt(v[None, :, None] + eps)
                * g[None, :, None] + b[None, :, None])

    out = jax.nn.relu(bn(conv(x, w1_oik), g1, b1, m1, v1))
    out = bn(conv(out, w2_oik), g2, b2, m2, v2)
    out = jax.nn.relu(out + x)
    return out.astype(io_dtype).astype(jnp.float32)


if __name__ == "__main__":
    # small shapes consistent with BasicBlock1D(inplanes=C, planes=C, stride=1)
    N, C, L = 2, 8, 16
    eps = 1e-5
    key = jax.random.PRNGKey(0)
    ks = jax.random.split(key, 11)

    # PyTorch-layout parameters (deterministic, synthetic)
    x_ncl = jax.random.normal(ks[0], (N, C, L), jnp.float32)          # NCL input
    w1 = jax.random.normal(ks[1], (C, C, 3), jnp.float32) * 0.2       # Conv1d weight (O,I,K)
    w2 = jax.random.normal(ks[2], (C, C, 3), jnp.float32) * 0.2
    g1 = 1.0 + 0.1 * jax.random.normal(ks[3], (C,), jnp.float32)      # bn1 gamma
    b1 = 0.1 * jax.random.normal(ks[4], (C,), jnp.float32)            # bn1 beta
    m1 = 0.1 * jax.random.normal(ks[5], (C,), jnp.float32)            # bn1 running_mean
    v1 = jnp.abs(jax.random.normal(ks[6], (C,), jnp.float32)) + 0.5   # bn1 running_var
    g2 = 1.0 + 0.1 * jax.random.normal(ks[7], (C,), jnp.float32)
    b2 = 0.1 * jax.random.normal(ks[8], (C,), jnp.float32)
    m2 = 0.1 * jax.random.normal(ks[9], (C,), jnp.float32)
    v2 = jnp.abs(jax.random.normal(ks[10], (C,), jnp.float32)) + 0.5

    out = basic_block_1d(x_ncl, w1, g1, b1, m1, v1, w2, g2, b2, m2, v2, eps=eps)
    out = jax.block_until_ready(out)
    assert out.shape == (N, C, L)

    # tight check: reference with the kernel's bf16 activation-stream + bf16 matmul-operand
    # rounding (f32 accumulation). Remaining delta is reduction-order / 1-ulp cast noise.
    ref = jax.block_until_ready(
        _reference_ncl(x_ncl, w1, g1, b1, m1, v1, w2, g2, b2, m2, v2, eps,
                       conv_dtype=jnp.bfloat16, io_dtype=jnp.bfloat16))
    err = float(jnp.max(jnp.abs(out - ref)))
    assert err < 5e-2, f"max abs error vs bf16-stream reference: {err}"

    # loose sanity check against a pure-f32 reference (bf16 rounding only)
    ref32 = jax.block_until_ready(
        _reference_ncl(x_ncl, w1, g1, b1, m1, v1, w2, g2, b2, m2, v2, eps,
                       conv_dtype=jnp.float32, io_dtype=jnp.float32))
    err32 = float(jnp.max(jnp.abs(out - ref32)))
    assert err32 < 1.5e-1, f"max abs error vs f32 reference: {err32}"

    print("KERNEL_OK")
</pallas_src>

<mosaic_0001>
module attributes {stable_mosaic.version = 11 : i64} {
  func.func @_basic_block_kernel(%arg0: i32, %arg1: memref<32x128xbf16, #tpu.memory_space<vmem>>, %arg2: memref<384x128xbf16, #tpu.memory_space<vmem>>, %arg3: memref<1x128xf32, #tpu.memory_space<vmem>>, %arg4: memref<1x128xf32, #tpu.memory_space<vmem>>, %arg5: memref<384x128xbf16, #tpu.memory_space<vmem>>, %arg6: memref<1x128xf32, #tpu.memory_space<vmem>>, %arg7: memref<1x128xf32, #tpu.memory_space<vmem>>, %arg8: memref<32x128xbf16, #tpu.memory_space<vmem>>) attributes {dimension_semantics = [#tpu.dimension_semantics<parallel>], iteration_bounds = array<i64: 1>, scalar_prefetch = 0 : i64, scratch_operands = 0 : i64, tpu.core_type = #tpu.core_type<tc>, window_params = [{transform_indices = @transform_0, window_bounds = array<i64: 32, 128>}, {pipeline_mode = #tpu.pipeline_mode<synchronous>, transform_indices = @transform_1, window_bounds = array<i64: 384, 128>}, {pipeline_mode = #tpu.pipeline_mode<synchronous>, transform_indices = @transform_2, window_bounds = array<i64: 1, 128>}, {pipeline_mode = #tpu.pipeline_mode<synchronous>, transform_indices = @transform_3, window_bounds = array<i64: 1, 128>}, {pipeline_mode = #tpu.pipeline_mode<synchronous>, transform_indices = @transform_4, window_bounds = array<i64: 384, 128>}, {pipeline_mode = #tpu.pipeline_mode<synchronous>, transform_indices = @transform_5, window_bounds = array<i64: 1, 128>}, {pipeline_mode = #tpu.pipeline_mode<synchronous>, transform_indices = @transform_6, window_bounds = array<i64: 1, 128>}, {transform_indices = @transform_7, window_bounds = array<i64: 32, 128>}]} {
    %c0 = arith.constant 0 : index
    %c0_0 = arith.constant 0 : index
    %0 = vector.load %arg1[%c0, %c0_0] : memref<32x128xbf16, #tpu.memory_space<vmem>>, vector<32x128xbf16>
    %1 = arith.extf %0 : vector<32x128xbf16> to vector<32x128xf32>
    %2 = tpu.iota {dimensions = array<i32: 0>} : vector<32x1xi32>
    %c16_i32 = arith.constant 16 : i32
    %c0_i32 = arith.constant 0 : i32
    %3 = arith.cmpi eq, %c16_i32, %c0_i32 : i32
    %c1_i32 = arith.constant 1 : i32
    %4 = arith.select %3, %c1_i32, %c16_i32 : i32
    %5 = vector.broadcast %4 : i32 to vector<32x1xi32>
    %6 = arith.remsi %2, %5 : vector<32x1xi32>
    %c0_i32_1 = arith.constant 0 : i32
    %7 = vector.broadcast %c0_i32_1 : i32 to vector<32x1xi32>
    %8 = arith.cmpi ne, %6, %7 : vector<32x1xi32>
    %c0_i32_2 = arith.constant 0 : i32
    %9 = vector.broadcast %c0_i32_2 : i32 to vector<32x1xi32>
    %10 = arith.cmpi slt, %6, %9 : vector<32x1xi32>
    %c0_i32_3 = arith.constant 0 : i32
    %11 = arith.cmpi slt, %4, %c0_i32_3 : i32
    %12 = vector.broadcast %11 : i1 to vector<32x1xi1>
    %13 = vector.broadcast %12 : vector<32x1xi1> to vector<32x1xi1>
    %14 = arith.xori %10, %13 : vector<32x1xi1>
    %15 = arith.andi %14, %8 : vector<32x1xi1>
    %16 = vector.broadcast %4 : i32 to vector<32x1xi32>
    %17 = arith.addi %6, %16 : vector<32x1xi32>
    %18 = arith.select %15, %17, %6 : vector<32x1xi1>, vector<32x1xi32>
    %c0_i32_4 = arith.constant 0 : i32
    %19 = vector.broadcast %c0_i32_4 : i32 to vector<32x1xi32>
    %20 = arith.cmpi ne, %18, %19 : vector<32x1xi32>
    %c15_i32 = arith.constant 15 : i32
    %21 = vector.broadcast %c15_i32 : i32 to vector<32x1xi32>
    %22 = arith.cmpi ne, %18, %21 : vector<32x1xi32>
    %cst = arith.constant 0.000000e+00 : f32
    %23 = vector.broadcast %cst : f32 to vector<32x128xf32>
    %c1_i32_5 = arith.constant 1 : i32
    %24 = tpu.dynamic_rotate %1 by %c1_i32_5 dim 0 : vector<32x128xf32>, i32 -> vector<32x128xf32>
    %25 = vector.shape_cast %20 : vector<32x1xi1> to vector<32x1xi1>
    %26 = vector.broadcast %25 : vector<32x1xi1> to vector<32x128xi1>
    %27 = arith.select %26, %24, %23 : vector<32x128xi1>, vector<32x128xf32>
    %c31_i32 = arith.constant 31 : i32
    %28 = tpu.dynamic_rotate %1 by %c31_i32 dim 0 : vector<32x128xf32>, i32 -> vector<32x128xf32>
    %29 = vector.shape_cast %22 : vector<32x1xi1> to vector<32x1xi1>
    %30 = vector.broadcast %29 : vector<32x1xi1> to vector<32x128xi1>
    %31 = arith.select %30, %28, %23 : vector<32x128xi1>, vector<32x128xf32>
    %32 = arith.truncf %1 : vector<32x128xf32> to vector<32x128xbf16>
    %c128 = arith.constant 128 : index
    %c0_6 = arith.constant 0 : index
    %33 = vector.load %arg2[%c128, %c0_6] : memref<384x128xbf16, #tpu.memory_space<vmem>>, vector<128x128xbf16>
    %cst_7 = arith.constant dense<0.000000e+00> : vector<32x128xf32>
    %34 = tpu.matmul %32, %33, %cst_7 {dimension_numbers = #tpu.dot_dimension_numbers<[1], [0], [0], [1], [0, 0, 1, 1], [], []>} : vector<32x128xbf16>, vector<128x128xbf16>, vector<32x128xf32> -> vector<32x128xf32>
    %35 = arith.truncf %27 : vector<32x128xf32> to vector<32x128xbf16>
    %c0_8 = arith.constant 0 : index
    %c0_9 = arith.constant 0 : index
    %36 = vector.load %arg2[%c0_8, %c0_9] : memref<384x128xbf16, #tpu.memory_space<vmem>>, vector<128x128xbf16>
    %cst_10 = arith.constant dense<0.000000e+00> : vector<32x128xf32>
    %37 = tpu.matmul %35, %36, %cst_10 {dimension_numbers = #tpu.dot_dimension_numbers<[1], [0], [0], [1], [0, 0, 1, 1], [], []>} : vector<32x128xbf16>, vector<128x128xbf16>, vector<32x128xf32> -> vector<32x128xf32>
    %38 = arith.addf %34, %37 : vector<32x128xf32>
    %39 = arith.truncf %31 : vector<32x128xf32> to vector<32x128xbf16>
    %c256 = arith.constant 256 : index
    %c0_11 = arith.constant 0 : index
    %40 = vector.load %arg2[%c256, %c0_11] : memref<384x128xbf16, #tpu.memory_space<vmem>>, vector<128x128xbf16>
    %cst_12 = arith.constant dense<0.000000e+00> : vector<32x128xf32>
    %41 = tpu.matmul %39, %40, %cst_12 {dimension_numbers = #tpu.dot_dimension_numbers<[1], [0], [0], [1], [0, 0, 1, 1], [], []>} : vector<32x128xbf16>, vector<128x128xbf16>, vector<32x128xf32> -> vector<32x128xf32>
    %42 = arith.addf %38, %41 : vector<32x128xf32>
    %c0_13 = arith.constant 0 : index
    %c0_14 = arith.constant 0 : index
    %43 = vector.load %arg3[%c0_13, %c0_14] : memref<1x128xf32, #tpu.memory_space<vmem>>, vector<1x128xf32>
    %44 = vector.broadcast %43 : vector<1x128xf32> to vector<32x128xf32>
    %45 = arith.mulf %42, %44 : vector<32x128xf32>
    %c0_15 = arith.constant 0 : index
    %c0_16 = arith.constant 0 : index
    %46 = vector.load %arg4[%c0_15, %c0_16] : memref<1x128xf32, #tpu.memory_space<vmem>>, vector<1x128xf32>
    %47 = vector.broadcast %46 : vector<1x128xf32> to vector<32x128xf32>
    %48 = arith.addf %45, %47 : vector<32x128xf32>
    %cst_17 = arith.constant 0.000000e+00 : f32
    %49 = vector.broadcast %cst_17 : f32 to vector<32x128xf32>
    %50 = arith.maximumf %48, %49 : vector<32x128xf32>
    %cst_18 = arith.constant 0.000000e+00 : f32
    %51 = vector.broadcast %cst_18 : f32 to vector<32x128xf32>
    %c1_i32_19 = arith.constant 1 : i32
    %52 = tpu.dynamic_rotate %50 by %c1_i32_19 dim 0 : vector<32x128xf32>, i32 -> vector<32x128xf32>
    %53 = vector.shape_cast %20 : vector<32x1xi1> to vector<32x1xi1>
    %54 = vector.broadcast %53 : vector<32x1xi1> to vector<32x128xi1>
    %55 = arith.select %54, %52, %51 : vector<32x128xi1>, vector<32x128xf32>
    %c31_i32_20 = arith.constant 31 : i32
    %56 = tpu.dynamic_rotate %50 by %c31_i32_20 dim 0 : vector<32x128xf32>, i32 -> vector<32x128xf32>
    %57 = vector.shape_cast %22 : vector<32x1xi1> to vector<32x1xi1>
    %58 = vector.broadcast %57 : vector<32x1xi1> to vector<32x128xi1>
    %59 = arith.select %58, %56, %51 : vector<32x128xi1>, vector<32x128xf32>
    %60 = arith.truncf %50 : vector<32x128xf32> to vector<32x128xbf16>
    %c128_21 = arith.constant 128 : index
    %c0_22 = arith.constant 0 : index
    %61 = vector.load %arg5[%c128_21, %c0_22] : memref<384x128xbf16, #tpu.memory_space<vmem>>, vector<128x128xbf16>
    %cst_23 = arith.constant dense<0.000000e+00> : vector<32x128xf32>
    %62 = tpu.matmul %60, %61, %cst_23 {dimension_numbers = #tpu.dot_dimension_numbers<[1], [0], [0], [1], [0, 0, 1, 1], [], []>} : vector<32x128xbf16>, vector<128x128xbf16>, vector<32x128xf32> -> vector<32x128xf32>
    %63 = arith.truncf %55 : vector<32x128xf32> to vector<32x128xbf16>
    %c0_24 = arith.constant 0 : index
    %c0_25 = arith.constant 0 : index
    %64 = vector.load %arg5[%c0_24, %c0_25] : memref<384x128xbf16, #tpu.memory_space<vmem>>, vector<128x128xbf16>
    %cst_26 = arith.constant dense<0.000000e+00> : vector<32x128xf32>
    %65 = tpu.matmul %63, %64, %cst_26 {dimension_numbers = #tpu.dot_dimension_numbers<[1], [0], [0], [1], [0, 0, 1, 1], [], []>} : vector<32x128xbf16>, vector<128x128xbf16>, vector<32x128xf32> -> vector<32x128xf32>
    %66 = arith.addf %62, %65 : vector<32x128xf32>
    %67 = arith.truncf %59 : vector<32x128xf32> to vector<32x128xbf16>
    %c256_27 = arith.constant 256 : index
    %c0_28 = arith.constant 0 : index
    %68 = vector.load %arg5[%c256_27, %c0_28] : memref<384x128xbf16, #tpu.memory_space<vmem>>, vector<128x128xbf16>
    %cst_29 = arith.constant dense<0.000000e+00> : vector<32x128xf32>
    %69 = tpu.matmul %67, %68, %cst_29 {dimension_numbers = #tpu.dot_dimension_numbers<[1], [0], [0], [1], [0, 0, 1, 1], [], []>} : vector<32x128xbf16>, vector<128x128xbf16>, vector<32x128xf32> -> vector<32x128xf32>
    %70 = arith.addf %66, %69 : vector<32x128xf32>
    %c0_30 = arith.constant 0 : index
    %c0_31 = arith.constant 0 : index
    %71 = vector.load %arg6[%c0_30, %c0_31] : memref<1x128xf32, #tpu.memory_space<vmem>>, vector<1x128xf32>
    %72 = vector.broadcast %71 : vector<1x128xf32> to vector<32x128xf32>
    %73 = arith.mulf %70, %72 : vector<32x128xf32>
    %c0_32 = arith.constant 0 : index
    %c0_33 = arith.constant 0 : index
    %74 = vector.load %arg7[%c0_32, %c0_33] : memref<1x128xf32, #tpu.memory_space<vmem>>, vector<1x128xf32>
    %75 = vector.broadcast %74 : vector<1x128xf32> to vector<32x128xf32>
    %76 = arith.addf %73, %75 : vector<32x128xf32>
    %77 = arith.addf %76, %1 : vector<32x128xf32>
    %cst_34 = arith.constant 0.000000e+00 : f32
    %78 = vector.broadcast %cst_34 : f32 to vector<32x128xf32>
    %79 = arith.maximumf %77, %78 : vector<32x128xf32>
    %80 = arith.truncf %79 : vector<32x128xf32> to vector<32x128xbf16>
    %c0_35 = arith.constant 0 : index
    %c0_36 = arith.constant 0 : index
    %81 = vector.load %arg8[%c0_35, %c0_36] : memref<32x128xbf16, #tpu.memory_space<vmem>>, vector<32x128xbf16>
    tpu.vector_store %arg8[%c0_35, %c0_36], %80 {strides = array<i32>} : memref<32x128xbf16, #tpu.memory_space<vmem>>, vector<32x128xbf16>,
    return
  }
  func.func @transform_0(%arg0: i32) -> (i32, i32) {
    %c0_i32 = arith.constant 0 : i32
    %c0_i32_0 = arith.constant 0 : i32
    return %arg0, %c0_i32 : i32, i32
  }
  func.func @transform_1(%arg0: i32) -> (i32, i32) {
    %c0_i32 = arith.constant 0 : i32
    %c0_i32_0 = arith.constant 0 : i32
    %c0_i32_1 = arith.constant 0 : i32
    return %c0_i32, %c0_i32_0 : i32, i32
  }
  func.func @transform_2(%arg0: i32) -> (i32, i32) {
    %c0_i32 = arith.constant 0 : i32
    %c0_i32_0 = arith.constant 0 : i32
    %c0_i32_1 = arith.constant 0 : i32
    return %c0_i32, %c0_i32_0 : i32, i32
  }
  func.func @transform_3(%arg0: i32) -> (i32, i32) {
    %c0_i32 = arith.constant 0 : i32
    %c0_i32_0 = arith.constant 0 : i32
    %c0_i32_1 = arith.constant 0 : i32
    return %c0_i32, %c0_i32_0 : i32, i32
  }
  func.func @transform_4(%arg0: i32) -> (i32, i32) {
    %c0_i32 = arith.constant 0 : i32
    %c0_i32_0 = arith.constant 0 : i32
    %c0_i32_1 = arith.constant 0 : i32
    return %c0_i32, %c0_i32_0 : i32, i32
  }
  func.func @transform_5(%arg0: i32) -> (i32, i32) {
    %c0_i32 = arith.constant 0 : i32
    %c0_i32_0 = arith.constant 0 : i32
    %c0_i32_1 = arith.constant 0 : i32
    return %c0_i32, %c0_i32_0 : i32, i32
  }
  func.func @transform_6(%arg0: i32) -> (i32, i32) {
    %c0_i32 = arith.constant 0 : i32
    %c0_i32_0 = arith.constant 0 : i32
    %c0_i32_1 = arith.constant 0 : i32
    return %c0_i32, %c0_i32_0 : i32, i32
  }
  func.func @transform_7(%arg0: i32) -> (i32, i32) {
    %c0_i32 = arith.constant 0 : i32
    %c0_i32_0 = arith.constant 0 : i32
    return %arg0, %c0_i32 : i32, i32
  }
}

</mosaic_0001>

<llo_original>
// kernel: basic_block_1d.1
$region0: #{basic_block_1d.1}
  #allocation0 [shape = 'u32[]', space=smem, size = 0x4, offset = 0x4, fixed_abs, tag = 'smem constant byte address 0x4 - core index']
  #allocation1 [shape = 'u32[144,128]{1,0:T(1,128)}', space=vmem, size = 0x12000, scoped, tag = 'internal scratch']
  %s0 = inlined_call_operand.vmem [shape: bf16[32,128], index: 0, kind: input, shape index: {}]
  %s1 = inlined_call_operand.vmem [shape: bf16[384,128], index: 1, kind: input, shape index: {}]
  %s2 = inlined_call_operand.vmem [shape: f32[1,128], index: 2, kind: input, shape index: {}]
  %s3 = inlined_call_operand.vmem [shape: f32[1,128], index: 3, kind: input, shape index: {}]
  %s4 = inlined_call_operand.vmem [shape: bf16[384,128], index: 4, kind: input, shape index: {}]
  %s5 = inlined_call_operand.vmem [shape: f32[1,128], index: 5, kind: input, shape index: {}]
  %s6 = inlined_call_operand.vmem [shape: f32[1,128], index: 6, kind: input, shape index: {}]
  %s7 = inlined_call_operand.vmem [shape: bf16[32,128], index: 7, kind: output, shape index: {}]
  %s8 = sld [smem:[#allocation0]]
  $region38: #{basic_block_1d.1} parent=0
    _
  %s10 = ssub.s32 1, %s8
  %s11 = scalar_select 0, %s10, %s8
  // Predicated region
  $region2: #{basic_block_1d.1} parent=0 // pred_check
    _
  $region3: #{basic_block_1d.1} parent=0 // pred_check_branch
    %13 = sbr.rel (0) target = $region5
  $region4: #{basic_block_1d.1} parent=0 // pred_region
    _
  $region5: #{basic_block_1d.1} parent=0 // pred_fallthru
    _
  // Predicated region
  $region6: #{basic_block_1d.1} parent=0 // pred_check
    _
  $region7: #{basic_block_1d.1} parent=0 // pred_check_branch
    %15 = sbr.rel (0) target = $region9
  $region8: #{basic_block_1d.1} parent=0 // pred_region
    _
  $region9: #{basic_block_1d.1} parent=0 // pred_fallthru
    _
  // Predicated region
  $region10: #{basic_block_1d.1} parent=0 // pred_check
    _
  $region11: #{basic_block_1d.1} parent=0 // pred_check_branch
    %17 = sbr.rel (0) target = $region13
  $region12: #{basic_block_1d.1} parent=0 // pred_region
    _
  $region13: #{basic_block_1d.1} parent=0 // pred_fallthru
    _
  // Predicated region
  $region14: #{basic_block_1d.1} parent=0 // pred_check
    _
  $region15: #{basic_block_1d.1} parent=0 // pred_check_branch
    %19 = sbr.rel (0) target = $region17
  $region16: #{basic_block_1d.1} parent=0 // pred_region
    _
  $region17: #{basic_block_1d.1} parent=0 // pred_fallthru
    _
  // Predicated region
  $region18: #{basic_block_1d.1} parent=0 // pred_check
    _
  $region19: #{basic_block_1d.1} parent=0 // pred_check_branch
    %21 = sbr.rel (0) target = $region21
  $region20: #{basic_block_1d.1} parent=0 // pred_region
    _
  $region21: #{basic_block_1d.1} parent=0 // pred_fallthru
    _
  // Predicated region
  $region22: #{basic_block_1d.1} parent=0 // pred_check
    _
  $region23: #{basic_block_1d.1} parent=0 // pred_check_branch
    %23 = sbr.rel (0) target = $region25
  $region24: #{basic_block_1d.1} parent=0 // pred_region
    _
  $region25: #{basic_block_1d.1} parent=0 // pred_fallthru
    _
  // Predicated region
  $region26: #{basic_block_1d.1} parent=0 // pred_check
    _
  $region27: #{basic_block_1d.1} parent=0 // pred_check_branch
    %25 = sbr.rel (0) target = $region29
  $region28: #{basic_block_1d.1} parent=0 // pred_region
    _
  $region29: #{basic_block_1d.1} parent=0 // pred_fallthru
    _
  %v27 = vld [vmem:[%s0] sm:$0xf]
  %v28 = vld [vmem:[%s0 + $0x4] sm:$0xf]
  %v29 = vld [vmem:[%s0 + $0x8] sm:$0xf]
  %v30 = vld [vmem:[%s0 + $0xc] sm:$0xf]
  %v31 = vunpack.c.l.bf16 %v27
  %v32 = vunpack.c.l.bf16 %v28
  %v33 = vunpack.c.l.bf16 %v29
  %v34 = vunpack.c.l.bf16 %v30
  %v35 = vlaneseq
  %v36 = vshrl.u32 %v35, 7
  %v37 = vadd.s32 %v36, 8
  %v38 = vadd.s32 %v36, 16
  %v39 = vadd.s32 %v36, 24
  %vm40 = vcmp.lt.s32.totalorder %v36, 0
  %v41 = vsub.s32 0, %v36
  %v42 = vsel %vm40, %v41, %v36
  %v43 = vshrl.u32 %v42, 4
  %v44 = vand.u32 %v42, 15
  %v45 = vsub.s32 0, %v44
  %v46 = vsel %vm40, %v45, %v44
  %vm47 = vcmp.lt.s32.totalorder %v37, 0
  %v48 = vsub.s32 0, %v37
  %v49 = vsel %vm47, %v48, %v37
  %v50 = vshrl.u32 %v49, 4
  %v51 = vand.u32 %v49, 15
  %v52 = vsub.s32 0, %v51
  %v53 = vsel %vm47, %v52, %v51
  %vm54 = vcmp.lt.s32.totalorder %v38, 0
  %v55 = vsub.s32 0, %v38
  %v56 = vsel %vm54, %v55, %v38
  %v57 = vshrl.u32 %v56, 4
  %v58 = vand.u32 %v56, 15
  %v59 = vsub.s32 0, %v58
  %v60 = vsel %vm54, %v59, %v58
  %vm61 = vcmp.lt.s32.totalorder %v39, 0
  %v62 = vsub.s32 0, %v39
  %v63 = vsel %vm61, %v62, %v39
  %v64 = vshrl.u32 %v63, 4
  %v65 = vand.u32 %v63, 15
  %v66 = vsub.s32 0, %v65
  %v67 = vsel %vm61, %v66, %v65
  %vm68 = vcmp.ne.s32.totalorder %v46, 0
  %vm69 = vcmp.ne.s32.totalorder %v53, 0
  %vm70 = vcmp.ne.s32.totalorder %v60, 0
  %vm71 = vcmp.ne.s32.totalorder %v67, 0
  %vm72 = vcmp.lt.s32.totalorder %v46, 0
  %vm73 = vcmp.lt.s32.totalorder %v53, 0
  %vm74 = vcmp.lt.s32.totalorder %v60, 0
  %vm75 = vcmp.lt.s32.totalorder %v67, 0
  %vm76 = vmand %vm72, %vm68
  %vm77 = vmand %vm73, %vm69
  %vm78 = vmand %vm74, %vm70
  %vm79 = vmand %vm75, %vm71
  %v80 = vadd.s32 %v46, 16
  %v81 = vadd.s32 %v53, 16
  %v82 = vadd.s32 %v60, 16
  %v83 = vadd.s32 %v67, 16
  %v84 = vsel %vm76, %v80, %v46
  %v85 = vsel %vm77, %v81, %v53
  %v86 = vsel %vm78, %v82, %v60
  %v87 = vsel %vm79, %v83, %v67
  %vm88 = vcmp.ne.s32.totalorder %v84, 0
  %vm89 = vcmp.ne.s32.totalorder %v85, 0
  %vm90 = vcmp.ne.s32.totalorder %v86, 0
  %vm91 = vcmp.ne.s32.totalorder %v87, 0
  %vm92 = vcmp.ne.s32.totalorder %v84, 15
  %vm93 = vcmp.ne.s32.totalorder %v85, 15
  %vm94 = vcmp.ne.s32.totalorder %v86, 15
  %vm95 = vcmp.ne.s32.totalorder %v87, 15
  %v96 = vrot.slane %v31, 7
  %v97 = vrot.slane %v32, 7
  %v98 = vrot.slane %v33, 7
  %v99 = vrot.slane %v34, 7
  %vm100 = vcmp.lt.s32.totalorder %v36, 1
  %v101 = vsel %vm100, %v98, %v99
  %v102 = vsel %vm100, %v97, %v98
  %v103 = vsel %vm100, %v96, %v97
  %v104 = vsel %vm100, %v99, %v96
  %v105 = vsel %vm88, 1, 0
  %v106 = vsel %vm89, 1, 0
  %v107 = vsel %vm90, 1, 0
  %v108 = vsel %vm91, 1, 0
  %vm109 = vcmp.eq.s32.totalorder %v105, 1
  %vm110 = vcmp.eq.s32.totalorder %v106, 1
  %vm111 = vcmp.eq.s32.totalorder %v107, 1
  %vm112 = vcmp.eq.s32.totalorder %v108, 1
  %v113 = vsel %vm109, %v104, 0.0
  %v114 = vsel %vm110, %v103, 0.0
  %v115 = vsel %vm111, %v102, 0.0
  %v116 = vsel %vm112, %v101, 0.0
  %v117 = vrot.slane %v31, 1
  %v118 = vrot.slane %v32, 1
  %v119 = vrot.slane %v33, 1
  %v120 = vrot.slane %v34, 1
  %vm121 = vcmp.lt.s32.totalorder %v36, 7
  %v122 = vsel %vm121, %v119, %v120
  %v123 = vsel %vm121, %v118, %v119
  %v124 = vsel %vm121, %v117, %v118
  %v125 = vsel %vm121, %v120, %v117
  %v126 = vsel %vm92, 1, 0
  %v127 = vsel %vm93, 1, 0
  %v128 = vsel %vm94, 1, 0
  %v129 = vsel %vm95, 1, 0
  %vm130 = vcmp.eq.s32.totalorder %v126, 1
  %vm131 = vcmp.eq.s32.totalorder %v127, 1
  %vm132 = vcmp.eq.s32.totalorder %v128, 1
  %vm133 = vcmp.eq.s32.totalorder %v129, 1
  %v134 = vsel %vm130, %v124, 0.0
  %v135 = vsel %vm131, %v123, 0.0
  %v136 = vsel %vm132, %v122, 0.0
  %v137 = vsel %vm133, %v125, 0.0
  %v138 = vld [vmem:[%s1 + $0x40] sm:$0xf]
  %v139 = vld [vmem:[%s1 + $0x44] sm:$0xf]
  %v140 = vld [vmem:[%s1 + $0x48] sm:$0xf]
  %v141 = vld [vmem:[%s1 + $0x4c] sm:$0xf]
  %v142 = vld [vmem:[%s1 + $0x50] sm:$0xf]
  %v143 = vld [vmem:[%s1 + $0x54] sm:$0xf]
  %v144 = vld [vmem:[%s1 + $0x58] sm:$0xf]
  %v145 = vld [vmem:[%s1 + $0x5c] sm:$0xf]
  %v146 = vld [vmem:[%s1 + $0x60] sm:$0xf]
  %v147 = vld [vmem:[%s1 + $0x64] sm:$0xf]
  %v148 = vld [vmem:[%s1 + $0x68] sm:$0xf]
  %v149 = vld [vmem:[%s1 + $0x6c] sm:$0xf]
  %v150 = vld [vmem:[%s1 + $0x70] sm:$0xf]
  %v151 = vld [vmem:[%s1 + $0x74] sm:$0xf]
  %v152 = vld [vmem:[%s1 + $0x78] sm:$0xf]
  %v153 = vld [vmem:[%s1 + $0x7c] sm:$0xf]
  %v154 = vpack.c.bf16 %v114, %v113
  %v155 = vpack.c.bf16 %v116, %v115
  %v156 = vld [vmem:[%s1] sm:$0xf]
  %v157 = vld [vmem:[%s1 + $0x4] sm:$0xf]
  %v158 = vld [vmem:[%s1 + $0x8] sm:$0xf]
  %v159 = vld [vmem:[%s1 + $0xc] sm:$0xf]
  %v160 = vld [vmem:[%s1 + $0x10] sm:$0xf]
  %v161 = vld [vmem:[%s1 + $0x14] sm:$0xf]
  %v162 = vld [vmem:[%s1 + $0x18] sm:$0xf]
  %v163 = vld [vmem:[%s1 + $0x1c] sm:$0xf]
  %v164 = vld [vmem:[%s1 + $0x20] sm:$0xf]
  %v165 = vld [vmem:[%s1 + $0x24] sm:$0xf]
  %v166 = vld [vmem:[%s1 + $0x28] sm:$0xf]
  %v167 = vld [vmem:[%s1 + $0x2c] sm:$0xf]
  %v168 = vld [vmem:[%s1 + $0x30] sm:$0xf]
  %v169 = vld [vmem:[%s1 + $0x34] sm:$0xf]
  %v170 = vld [vmem:[%s1 + $0x38] sm:$0xf]
  %v171 = vld [vmem:[%s1 + $0x3c] sm:$0xf]
  %v188 = vunpack.c.l.b16 %v156
  %v189 = vunpack.c.l.b16 %v157
  %v190 = vunpack.c.l.b16 %v158
  %v191 = vunpack.c.l.b16 %v159
  %v192 = vunpack.c.l.b16 %v160
  %v193 = vunpack.c.l.b16 %v161
  %v194 = vunpack.c.l.b16 %v162
  %v195 = vunpack.c.l.b16 %v163
  %v196 = vunpack.c.l.b16 %v164
  %v197 = vunpack.c.l.b16 %v165
  %v198 = vunpack.c.l.b16 %v166
  %v199 = vunpack.c.l.b16 %v167
  %v200 = vunpack.c.l.b16 %v168
  %v201 = vunpack.c.l.b16 %v169
  %v202 = vunpack.c.l.b16 %v170
  %v203 = vunpack.c.l.b16 %v171
  %v204 = vpack.c.b16 %v189, %v188
  %v205 = vpack.c.b16 %v191, %v190
  %v206 = vpack.c.b16 %v193, %v192
  %v207 = vpack.c.b16 %v195, %v194
  %v208 = vpack.c.b16 %v197, %v196
  %v209 = vpack.c.b16 %v199, %v198
  %v210 = vpack.c.b16 %v201, %v200
  %v211 = vpack.c.b16 %v203, %v202
  %220 = vmatprep.subr.bf16.mxu0 0
  %221 = vmatpush1.bf16.msra.mxu0 %v211
  %222 = vmatprep.subr.bf16.mxu0 0
  %223 = vmatpush1.bf16.msra.mxu0 %v210
  %224 = vmatprep.subr.bf16.mxu0 0
  %225 = vmatpush1.bf16.msra.mxu0 %v209
  %226 = vmatprep.subr.bf16.mxu0 0
  %227 = vmatpush1.bf16.msra.mxu0 %v208
  %228 = vmatprep.subr.bf16.mxu0 0
  %229 = vmatpush1.bf16.msra.mxu0 %v207
  %230 = vmatprep.subr.bf16.mxu0 0
  %231 = vmatpush1.bf16.msra.mxu0 %v206
  %232 = vmatprep.subr.bf16.mxu0 0
  %233 = vmatpush1.bf16.msra.mxu0 %v205
  %234 = vmatprep.subr.bf16.mxu0 0
  %235 = vmatpush1.bf16.msra.mxu0 %v204
  %236 = vmatprep.subr.bf16.mxu0 0
  %237 = vmatpush2.bf16.msra.mxu0 0
  %238 = vmatprep.subr.bf16.mxu0 0
  %239 = vmatpush2.bf16.msra.mxu0 0
  %240 = vmatprep.subr.bf16.mxu0 0
  %241 = vmatpush2.bf16.msra.mxu0 0
  %242 = vmatprep.subr.bf16.mxu0 0
  %243 = vmatpush2.bf16.msra.mxu0 0
  %244 = vmatprep.subr.bf16.mxu0 0
  %245 = vmatpush2.bf16.msra.mxu0 0
  %246 = vmatprep.subr.bf16.mxu0 0
  %247 = vmatpush2.bf16.msra.mxu0 0
  %248 = vmatprep.subr.bf16.mxu0 0
  %249 = vmatpush2.bf16.msra.mxu0 0
  %250 = vmatprep.subr.bf16.mxu0 0
  %251 = vmatpush2.bf16.msra.mxu0 0
  %252 = vmatprep.mubr.bf16.mxu0 0
  %253 = vmatmul.mubr.bf16.gmra.mxu0 %v154
  %v254 = vpop.f32.mrf.mxu0
  %v255 = vadd.f32 0.0, %v254
  %v256 = vpop.f32.mrf.mxu0
  %v257 = vpop.f32.mrf.mxu0
  %v258 = vadd.f32 0.0, %v257
  %v259 = vpop.f32.mrf.mxu0
  %260 = vmatprep.mubr.bf16.mxu0 0
  %261 = vmatmul.mubr.bf16.gmra.mxu0 %v155
  %v262 = vpop.f32.mrf.mxu0
  %v263 = vadd.f32 0.0, %v262
  %v264 = vpop.f32.mrf.mxu0
  %v265 = vpop.f32.mrf.mxu0
  %v266 = vadd.f32 0.0, %v265
  %v267 = vpop.f32.mrf.mxu0
  %268 = vdwg.mxu0
  %v273 = vunpack.c.l.b16 %v27
  %v274 = vunpack.c.l.b16 %v28
  %v275 = vunpack.c.l.b16 %v29
  %v276 = vunpack.c.l.b16 %v30
  %v277 = vpack.c.b16 %v274, %v273
  %v278 = vpack.c.b16 %v276, %v275
  %v297 = vunpack.c.l.b16 %v138
  %v298 = vunpack.c.l.b16 %v139
  %v299 = vunpack.c.l.b16 %v140
  %v300 = vunpack.c.l.b16 %v141
  %v301 = vunpack.c.l.b16 %v142
  %v302 = vunpack.c.l.b16 %v143
  %v303 = vunpack.c.l.b16 %v144
  %v304 = vunpack.c.l.b16 %v145
  %v305 = vunpack.c.l.b16 %v146
  %v306 = vunpack.c.l.b16 %v147
  %v307 = vunpack.c.l.b16 %v148
  %v308 = vunpack.c.l.b16 %v149
  %v309 = vunpack.c.l.b16 %v150
  %v310 = vunpack.c.l.b16 %v151
  %v311 = vunpack.c.l.b16 %v152
  %v312 = vunpack.c.l.b16 %v153
  %v313 = vpack.c.b16 %v298, %v297
  %v314 = vpack.c.b16 %v300, %v299
  %v315 = vpack.c.b16 %v302, %v301
  %v316 = vpack.c.b16 %v304, %v303
  %v317 = vpack.c.b16 %v306, %v305
  %v318 = vpack.c.b16 %v308, %v307
  %v319 = vpack.c.b16 %v310, %v309
  %v320 = vpack.c.b16 %v312, %v311
  %329 = vmatprep.subr.bf16.mxu0 0
  %330 = vmatpush1.bf16.msra.mxu0 %v320
  %331 = vmatprep.subr.bf16.mxu0 0
  %332 = vmatpush1.bf16.msra.mxu0 %v319
  %333 = vmatprep.subr.bf16.mxu0 0
  %334 = vmatpush1.bf16.msra.mxu0 %v318
  %335 = vmatprep.subr.bf16.mxu0 0
  %336 = vmatpush1.bf16.msra.mxu0 %v317
  %337 = vmatprep.subr.bf16.mxu0 0
  %338 = vmatpush1.bf16.msra.mxu0 %v316
  %339 = vmatprep.subr.bf16.mxu0 0
  %340 = vmatpush1.bf16.msra.mxu0 %v315
  %341 = vmatprep.subr.bf16.mxu0 0
  %342 = vmatpush1.bf16.msra.mxu0 %v314
  %343 = vmatprep.subr.bf16.mxu0 0
  %344 = vmatpush1.bf16.msra.mxu0 %v313
  %345 = vmatprep.subr.bf16.mxu0 0
  %346 = vmatpush2.bf16.msra.mxu0 0
  %347 = vmatprep.subr.bf16.mxu0 0
  %348 = vmatpush2.bf16.msra.mxu0 0
  %349 = vmatprep.subr.bf16.mxu0 0
  %350 = vmatpush2.bf16.msra.mxu0 0
  %351 = vmatprep.subr.bf16.mxu0 0
  %352 = vmatpush2.bf16.msra.mxu0 0
  %353 = vmatprep.subr.bf16.mxu0 0
  %354 = vmatpush2.bf16.msra.mxu0 0
  %355 = vmatprep.subr.bf16.mxu0 0
  %356 = vmatpush2.bf16.msra.mxu0 0
  %357 = vmatprep.subr.bf16.mxu0 0
  %358 = vmatpush2.bf16.msra.mxu0 0
  %359 = vmatprep.subr.bf16.mxu0 0
  %360 = vmatpush2.bf16.msra.mxu0 0
  %361 = vmatprep.mubr.bf16.mxu0 0
  %362 = vmatmul.mubr.bf16.gmra.mxu0 %v277
  %v363 = vpop.f32.mrf.mxu0
  %v364 = vadd.f32 %v255, %v363
  %v365 = vpop.f32.mrf.mxu0
  %v366 = vpop.f32.mrf.mxu0
  %v367 = vadd.f32 %v258, %v366
  %v368 = vpop.f32.mrf.mxu0
  %369 = vmatprep.mubr.bf16.mxu0 0
  %370 = vmatmul.mubr.bf16.gmra.mxu0 %v278
  %v371 = vpop.f32.mrf.mxu0
  %v372 = vadd.f32 %v263, %v371
  %v373 = vpop.f32.mrf.mxu0
  %v374 = vpop.f32.mrf.mxu0
  %v375 = vadd.f32 %v266, %v374
  %v376 = vpop.f32.mrf.mxu0
  %377 = vdwg.mxu0
  %v378 = vpack.c.bf16 %v135, %v134
  %v379 = vpack.c.bf16 %v137, %v136
  %v380 = vld [vmem:[%s1 + $0x80] sm:$0xf]
  %v381 = vld [vmem:[%s1 + $0x84] sm:$0xf]
  %v382 = vld [vmem:[%s1 + $0x88] sm:$0xf]
  %v383 = vld [vmem:[%s1 + $0x8c] sm:$0xf]
  %v384 = vld [vmem:[%s1 + $0x90] sm:$0xf]
  %v385 = vld [vmem:[%s1 + $0x94] sm:$0xf]
  %v386 = vld [vmem:[%s1 + $0x98] sm:$0xf]
  %v387 = vld [vmem:[%s1 + $0x9c] sm:$0xf]
  %v388 = vld [vmem:[%s1 + $0xa0] sm:$0xf]
  %v389 = vld [vmem:[%s1 + $0xa4] sm:$0xf]
  %v390 = vld [vmem:[%s1 + $0xa8] sm:$0xf]
  %v391 = vld [vmem:[%s1 + $0xac] sm:$0xf]
  %v392 = vld [vmem:[%s1 + $0xb0] sm:$0xf]
  %v393 = vld [vmem:[%s1 + $0xb4] sm:$0xf]
  %v394 = vld [vmem:[%s1 + $0xb8] sm:$0xf]
  %v395 = vld [vmem:[%s1 + $0xbc] sm:$0xf]
  %v412 = vunpack.c.l.b16 %v380
  %v413 = vunpack.c.l.b16 %v381
  %v414 = vunpack.c.l.b16 %v382
  %v415 = vunpack.c.l.b16 %v383
  %v416 = vunpack.c.l.b16 %v384
  %v417 = vunpack.c.l.b16 %v385
  %v418 = vunpack.c.l.b16 %v386
  %v419 = vunpack.c.l.b16 %v387
  %v420 = vunpack.c.l.b16 %v388
  %v421 = vunpack.c.l.b16 %v389
  %v422 = vunpack.c.l.b16 %v390
  %v423 = vunpack.c.l.b16 %v391
  %v424 = vunpack.c.l.b16 %v392
  %v425 = vunpack.c.l.b16 %v393
  %v426 = vunpack.c.l.b16 %v394
  %v427 = vunpack.c.l.b16 %v395
  %v428 = vpack.c.b16 %v413, %v412
  %v429 = vpack.c.b16 %v415, %v414
  %v430 = vpack.c.b16 %v417, %v416
  %v431 = vpack.c.b16 %v419, %v418
  %v432 = vpack.c.b16 %v421, %v420
  %v433 = vpack.c.b16 %v423, %v422
  %v434 = vpack.c.b16 %v425, %v424
  %v435 = vpack.c.b16 %v427, %v426
  %444 = vmatprep.subr.bf16.mxu0 0
  %445 = vmatpush1.bf16.msra.mxu0 %v435
  %446 = vmatprep.subr.bf16.mxu0 0
  %447 = vmatpush1.bf16.msra.mxu0 %v434
  %448 = vmatprep.subr.bf16.mxu0 0
  %449 = vmatpush1.bf16.msra.mxu0 %v433
  %450 = vmatprep.subr.bf16.mxu0 0
  %451 = vmatpush1.bf16.msra.mxu0 %v432
  %452 = vmatprep.subr.bf16.mxu0 0
  %453 = vmatpush1.bf16.msra.mxu0 %v431
  %454 = vmatprep.subr.bf16.mxu0 0
  %455 = vmatpush1.bf16.msra.mxu0 %v430
  %456 = vmatprep.subr.bf16.mxu0 0
  %457 = vmatpush1.bf16.msra.mxu0 %v429
  %458 = vmatprep.subr.bf16.mxu0 0
  %459 = vmatpush1.bf16.msra.mxu0 %v428
  %460 = vmatprep.subr.bf16.mxu0 0
  %461 = vmatpush2.bf16.msra.mxu0 0
  %462 = vmatprep.subr.bf16.mxu0 0
  %463 = vmatpush2.bf16.msra.mxu0 0
  %464 = vmatprep.subr.bf16.mxu0 0
  %465 = vmatpush2.bf16.msra.mxu0 0
  %466 = vmatprep.subr.bf16.mxu0 0
  %467 = vmatpush2.bf16.msra.mxu0 0
  %468 = vmatprep.subr.bf16.mxu0 0
  %469 = vmatpush2.bf16.msra.mxu0 0
  %470 = vmatprep.subr.bf16.mxu0 0
  %471 = vmatpush2.bf16.msra.mxu0 0
  %472 = vmatprep.subr.bf16.mxu0 0
  %473 = vmatpush2.bf16.msra.mxu0 0
  %474 = vmatprep.subr.bf16.mxu0 0
  %475 = vmatpush2.bf16.msra.mxu0 0
  %476 = vmatprep.mubr.bf16.mxu0 0
  %477 = vmatmul.mubr.bf16.gmra.mxu0 %v378
  %v478 = vpop.f32.mrf.mxu0
  %v479 = vadd.f32 0.0, %v478
  %v480 = vpop.f32.mrf.mxu0
  %v481 = vpop.f32.mrf.mxu0
  %v482 = vadd.f32 0.0, %v481
  %v483 = vpop.f32.mrf.mxu0
  %484 = vmatprep.mubr.bf16.mxu0 0
  %485 = vmatmul.mubr.bf16.gmra.mxu0 %v379
  %v486 = vpop.f32.mrf.mxu0
  %v487 = vadd.f32 0.0, %v486
  %v488 = vpop.f32.mrf.mxu0
  %v489 = vpop.f32.mrf.mxu0
  %v490 = vadd.f32 0.0, %v489
  %v491 = vpop.f32.mrf.mxu0
  %492 = vdwg.mxu0
  %v493 = vadd.f32 %v364, %v479
  %v494 = vadd.f32 %v367, %v482
  %v495 = vadd.f32 %v372, %v487
  %v496 = vadd.f32 %v375, %v490
  %v497 = vld [vmem:[%s2] sm:$0x1]
  %v499 = vlaneseq
  %v500 = vshrl.u32 %v499, 7
  %v501 = vsub.s32 0, %v500
  %v502 = vrot.slane %v497, %v501
  %v504 = vmul.f32 %v493, %v502
  %v505 = vmul.f32 %v494, %v502
  %v506 = vmul.f32 %v495, %v502
  %v507 = vmul.f32 %v496, %v502
  %v508 = vld [vmem:[%s3] sm:$0x1]
  %v510 = vlaneseq
  %v511 = vshrl.u32 %v510, 7
  %v512 = vsub.s32 0, %v511
  %v513 = vrot.slane %v508, %v512
  %v515 = vadd.f32 %v504, %v513
  %v516 = vadd.f32 %v505, %v513
  %v517 = vadd.f32 %v506, %v513
  %v518 = vadd.f32 %v507, %v513
  %v519 = vmax.f32 %v515, 0.0
  %v520 = vmax.f32 %v516, 0.0
  %v521 = vmax.f32 %v517, 0.0
  %v522 = vmax.f32 %v518, 0.0
  %v523 = vrot.slane %v519, 7
  %v524 = vrot.slane %v520, 7
  %v525 = vrot.slane %v521, 7
  %v526 = vrot.slane %v522, 7
  %v527 = vsel %vm100, %v525, %v526
  %v528 = vsel %vm100, %v524, %v525
  %v529 = vsel %vm100, %v523, %v524
  %v530 = vsel %vm100, %v526, %v523
  %v531 = vsel %vm109, %v530, 0.0
  %v532 = vsel %vm110, %v529, 0.0
  %v533 = vsel %vm111, %v528, 0.0
  %v534 = vsel %vm112, %v527, 0.0
  %v535 = vrot.slane %v519, 1
  %v536 = vrot.slane %v520, 1
  %v537 = vrot.slane %v521, 1
  %v538 = vrot.slane %v522, 1
  %v539 = vsel %vm121, %v537, %v538
  %v540 = vsel %vm121, %v536, %v537
  %v541 = vsel %vm121, %v535, %v536
  %v542 = vsel %vm121, %v538, %v535
  %v543 = vsel %vm130, %v541, 0.0
  %v544 = vsel %vm131, %v540, 0.0
  %v545 = vsel %vm132, %v539, 0.0
  %v546 = vsel %vm133, %v542, 0.0
  %v547 = vpack.c.bf16 %v520, %v519
  %v548 = vpack.c.bf16 %v522, %v521
  %v549 = vld [vmem:[%s4 + $0x40] sm:$0xf]
  %v550 = vld [vmem:[%s4 + $0x44] sm:$0xf]
  %v551 = vld [vmem:[%s4 + $0x48] sm:$0xf]
  %v552 = vld [vmem:[%s4 + $0x4c] sm:$0xf]
  %v553 = vld [vmem:[%s4 + $0x50] sm:$0xf]
  %v554 = vld [vmem:[%s4 + $0x54] sm:$0xf]
  %v555 = vld [vmem:[%s4 + $0x58] sm:$0xf]
  %v556 = vld [vmem:[%s4 + $0x5c] sm:$0xf]
  %v557 = vld [vmem:[%s4 + $0x60] sm:$0xf]
  %v558 = vld [vmem:[%s4 + $0x64] sm:$0xf]
  %v559 = vld [vmem:[%s4 + $0x68] sm:$0xf]
  %v560 = vld [vmem:[%s4 + $0x6c] sm:$0xf]
  %v561 = vld [vmem:[%s4 + $0x70] sm:$0xf]
  %v562 = vld [vmem:[%s4 + $0x74] sm:$0xf]
  %v563 = vld [vmem:[%s4 + $0x78] sm:$0xf]
  %v564 = vld [vmem:[%s4 + $0x7c] sm:$0xf]
  %v565 = vpack.c.bf16 %v532, %v531
  %v566 = vpack.c.bf16 %v534, %v533
  %v567 = vld [vmem:[%s4] sm:$0xf]
  %v568 = vld [vmem:[%s4 + $0x4] sm:$0xf]
  %v569 = vld [vmem:[%s4 + $0x8] sm:$0xf]
  %v570 = vld [vmem:[%s4 + $0xc] sm:$0xf]
  %v571 = vld [vmem:[%s4 + $0x10] sm:$0xf]
  %v572 = vld [vmem:[%s4 + $0x14] sm:$0xf]
  %v573 = vld [vmem:[%s4 + $0x18] sm:$0xf]
  %v574 = vld [vmem:[%s4 + $0x1c] sm:$0xf]
  %v575 = vld [vmem:[%s4 + $0x20] sm:$0xf]
  %v576 = vld [vmem:[%s4 + $0x24] sm:$0xf]
  %v577 = vld [vmem:[%s4 + $0x28] sm:$0xf]
  %v578 = vld [vmem:[%s4 + $0x2c] sm:$0xf]
  %v579 = vld [vmem:[%s4 + $0x30] sm:$0xf]
  %v580 = vld [vmem:[%s4 + $0x34] sm:$0xf]
  %v581 = vld [vmem:[%s4 + $0x38] sm:$0xf]
  %v582 = vld [vmem:[%s4 + $0x3c] sm:$0xf]
  %v599 = vunpack.c.l.b16 %v567
  %v600 = vunpack.c.l.b16 %v568
  %v601 = vunpack.c.l.b16 %v569
  %v602 = vunpack.c.l.b16 %v570
  %v603 = vunpack.c.l.b16 %v571
  %v604 = vunpack.c.l.b16 %v572
  %v605 = vunpack.c.l.b16 %v573
  %v606 = vunpack.c.l.b16 %v574
  %v607 = vunpack.c.l.b16 %v575
  %v608 = vunpack.c.l.b16 %v576
  %v609 = vunpack.c.l.b16 %v577
  %v610 = vunpack.c.l.b16 %v578
  %v611 = vunpack.c.l.b16 %v579
  %v612 = vunpack.c.l.b16 %v580
  %v613 = vunpack.c.l.b16 %v581
  %v614 = vunpack.c.l.b16 %v582
  %v615 = vpack.c.b16 %v600, %v599
  %v616 = vpack.c.b16 %v602, %v601
  %v617 = vpack.c.b16 %v604, %v603
  %v618 = vpack.c.b16 %v606, %v605
  %v619 = vpack.c.b16 %v608, %v607
  %v620 = vpack.c.b16 %v610, %v609
  %v621 = vpack.c.b16 %v612, %v611
  %v622 = vpack.c.b16 %v614, %v613
  %631 = vmatprep.subr.bf16.mxu0 0
  %632 = vmatpush1.bf16.msra.mxu0 %v622
  %633 = vmatprep.subr.bf16.mxu0 0
  %634 = vmatpush1.bf16.msra.mxu0 %v621
  %635 = vmatprep.subr.bf16.mxu0 0
  %636 = vmatpush1.bf16.msra.mxu0 %v620
  %637 = vmatprep.subr.bf16.mxu0 0
  %638 = vmatpush1.bf16.msra.mxu0 %v619
  %639 = vmatprep.subr.bf16.mxu0 0
  %640 = vmatpush1.bf16.msra.mxu0 %v618
  %641 = vmatprep.subr.bf16.mxu0 0
  %642 = vmatpush1.bf16.msra.mxu0 %v617
  %643 = vmatprep.subr.bf16.mxu0 0
  %644 = vmatpush1.bf16.msra.mxu0 %v616
  %645 = vmatprep.subr.bf16.mxu0 0
  %646 = vmatpush1.bf16.msra.mxu0 %v615
  %647 = vmatprep.subr.bf16.mxu0 0
  %648 = vmatpush2.bf16.msra.mxu0 0
  %649 = vmatprep.subr.bf16.mxu0 0
  %650 = vmatpush2.bf16.msra.mxu0 0
  %651 = vmatprep.subr.bf16.mxu0 0
  %652 = vmatpush2.bf16.msra.mxu0 0
  %653 = vmatprep.subr.bf16.mxu0 0
  %654 = vmatpush2.bf16.msra.mxu0 0
  %655 = vmatprep.subr.bf16.mxu0 0
  %656 = vmatpush2.bf16.msra.mxu0 0
  %657 = vmatprep.subr.bf16.mxu0 0
  %658 = vmatpush2.bf16.msra.mxu0 0
  %659 = vmatprep.subr.bf16.mxu0 0
  %660 = vmatpush2.bf16.msra.mxu0 0
  %661 = vmatprep.subr.bf16.mxu0 0
  %662 = vmatpush2.bf16.msra.mxu0 0
  %663 = vmatprep.mubr.bf16.mxu0 0
  %664 = vmatmul.mubr.bf16.gmra.mxu0 %v565
  %v665 = vpop.f32.mrf.mxu0
  %v666 = vadd.f32 0.0, %v665
  %v667 = vpop.f32.mrf.mxu0
  %v668 = vpop.f32.mrf.mxu0
  %v669 = vadd.f32 0.0, %v668
  %v670 = vpop.f32.mrf.mxu0
  %671 = vmatprep.mubr.bf16.mxu0 0
  %672 = vmatmul.mubr.bf16.gmra.mxu0 %v566
  %v673 = vpop.f32.mrf.mxu0
  %v674 = vadd.f32 0.0, %v673
  %v675 = vpop.f32.mrf.mxu0
  %v676 = vpop.f32.mrf.mxu0
  %v677 = vadd.f32 0.0, %v676
  %v678 = vpop.f32.mrf.mxu0
  %679 = vdwg.mxu0
  %v696 = vunpack.c.l.b16 %v549
  %v697 = vunpack.c.l.b16 %v550
  %v698 = vunpack.c.l.b16 %v551
  %v699 = vunpack.c.l.b16 %v552
  %v700 = vunpack.c.l.b16 %v553
  %v701 = vunpack.c.l.b16 %v554
  %v702 = vunpack.c.l.b16 %v555
  %v703 = vunpack.c.l.b16 %v556
  %v704 = vunpack.c.l.b16 %v557
  %v705 = vunpack.c.l.b16 %v558
  %v706 = vunpack.c.l.b16 %v559
  %v707 = vunpack.c.l.b16 %v560
  %v708 = vunpack.c.l.b16 %v561
  %v709 = vunpack.c.l.b16 %v562
  %v710 = vunpack.c.l.b16 %v563
  %v711 = vunpack.c.l.b16 %v564
  %v712 = vpack.c.b16 %v697, %v696
  %v713 = vpack.c.b16 %v699, %v698
  %v714 = vpack.c.b16 %v701, %v700
  %v715 = vpack.c.b16 %v703, %v702
  %v716 = vpack.c.b16 %v705, %v704
  %v717 = vpack.c.b16 %v707, %v706
  %v718 = vpack.c.b16 %v709, %v708
  %v719 = vpack.c.b16 %v711, %v710
  %728 = vmatprep.subr.bf16.mxu0 0
  %729 = vmatpush1.bf16.msra.mxu0 %v719
  %730 = vmatprep.subr.bf16.mxu0 0
  %731 = vmatpush1.bf16.msra.mxu0 %v718
  %732 = vmatprep.subr.bf16.mxu0 0
  %733 = vmatpush1.bf16.msra.mxu0 %v717
  %734 = vmatprep.subr.bf16.mxu0 0
  %735 = vmatpush1.bf16.msra.mxu0 %v716
  %736 = vmatprep.subr.bf16.mxu0 0
  %737 = vmatpush1.bf16.msra.mxu0 %v715
  %738 = vmatprep.subr.bf16.mxu0 0
  %739 = vmatpush1.bf16.msra.mxu0 %v714
  %740 = vmatprep.subr.bf16.mxu0 0
  %741 = vmatpush1.bf16.msra.mxu0 %v713
  %742 = vmatprep.subr.bf16.mxu0 0
  %743 = vmatpush1.bf16.msra.mxu0 %v712
  %744 = vmatprep.subr.bf16.mxu0 0
  %745 = vmatpush2.bf16.msra.mxu0 0
  %746 = vmatprep.subr.bf16.mxu0 0
  %747 = vmatpush2.bf16.msra.mxu0 0
  %748 = vmatprep.subr.bf16.mxu0 0
  %749 = vmatpush2.bf16.msra.mxu0 0
  %750 = vmatprep.subr.bf16.mxu0 0
  %751 = vmatpush2.bf16.msra.mxu0 0
  %752 = vmatprep.subr.bf16.mxu0 0
  %753 = vmatpush2.bf16.msra.mxu0 0
  %754 = vmatprep.subr.bf16.mxu0 0
  %755 = vmatpush2.bf16.msra.mxu0 0
  %756 = vmatprep.subr.bf16.mxu0 0
  %757 = vmatpush2.bf16.msra.mxu0 0
  %758 = vmatprep.subr.bf16.mxu0 0
  %759 = vmatpush2.bf16.msra.mxu0 0
  %760 = vmatprep.mubr.bf16.mxu0 0
  %761 = vmatmul.mubr.bf16.gmra.mxu0 %v547
  %v762 = vpop.f32.mrf.mxu0
  %v763 = vadd.f32 %v666, %v762
  %v764 = vpop.f32.mrf.mxu0
  %v765 = vpop.f32.mrf.mxu0
  %v766 = vadd.f32 %v669, %v765
  %v767 = vpop.f32.mrf.mxu0
  %768 = vmatprep.mubr.bf16.mxu0 0
  %769 = vmatmul.mubr.bf16.gmra.mxu0 %v548
  %v770 = vpop.f32.mrf.mxu0
  %v771 = vadd.f32 %v674, %v770
  %v772 = vpop.f32.mrf.mxu0
  %v773 = vpop.f32.mrf.mxu0
  %v774 = vadd.f32 %v677, %v773
  %v775 = vpop.f32.mrf.mxu0
  %776 = vdwg.mxu0
  %v777 = vpack.c.bf16 %v544, %v543
  %v778 = vpack.c.bf16 %v546, %v545
  %v779 = vld [vmem:[%s4 + $0x80] sm:$0xf]
  %v780 = vld [vmem:[%s4 + $0x84] sm:$0xf]
  %v781 = vld [vmem:[%s4 + $0x88] sm:$0xf]
  %v782 = vld [vmem:[%s4 + $0x8c] sm:$0xf]
  %v783 = vld [vmem:[%s4 + $0x90] sm:$0xf]
  %v784 = vld [vmem:[%s4 + $0x94] sm:$0xf]
  %v785 = vld [vmem:[%s4 + $0x98] sm:$0xf]
  %v786 = vld [vmem:[%s4 + $0x9c] sm:$0xf]
  %v787 = vld [vmem:[%s4 + $0xa0] sm:$0xf]
  %v788 = vld [vmem:[%s4 + $0xa4] sm:$0xf]
  %v789 = vld [vmem:[%s4 + $0xa8] sm:$0xf]
  %v790 = vld [vmem:[%s4 + $0xac] sm:$0xf]
  %v791 = vld [vmem:[%s4 + $0xb0] sm:$0xf]
  %v792 = vld [vmem:[%s4 + $0xb4] sm:$0xf]
  %v793 = vld [vmem:[%s4 + $0xb8] sm:$0xf]
  %v794 = vld [vmem:[%s4 + $0xbc] sm:$0xf]
  %v811 = vunpack.c.l.b16 %v779
  %v812 = vunpack.c.l.b16 %v780
  %v813 = vunpack.c.l.b16 %v781
  %v814 = vunpack.c.l.b16 %v782
  %v815 = vunpack.c.l.b16 %v783
  %v816 = vunpack.c.l.b16 %v784
  %v817 = vunpack.c.l.b16 %v785
  %v818 = vunpack.c.l.b16 %v786
  %v819 = vunpack.c.l.b16 %v787
  %v820 = vunpack.c.l.b16 %v788
  %v821 = vunpack.c.l.b16 %v789
  %v822 = vunpack.c.l.b16 %v790
  %v823 = vunpack.c.l.b16 %v791
  %v824 = vunpack.c.l.b16 %v792
  %v825 = vunpack.c.l.b16 %v793
  %v826 = vunpack.c.l.b16 %v794
  %v827 = vpack.c.b16 %v812, %v811
  %v828 = vpack.c.b16 %v814, %v813
  %v829 = vpack.c.b16 %v816, %v815
  %v830 = vpack.c.b16 %v818, %v817
  %v831 = vpack.c.b16 %v820, %v819
  %v832 = vpack.c.b16 %v822, %v821
  %v833 = vpack.c.b16 %v824, %v823
  %v834 = vpack.c.b16 %v826, %v825
  %843 = vmatprep.subr.bf16.mxu0 0
  %844 = vmatpush1.bf16.msra.mxu0 %v834
  %845 = vmatprep.subr.bf16.mxu0 0
  %846 = vmatpush1.bf16.msra.mxu0 %v833
  %847 = vmatprep.subr.bf16.mxu0 0
  %848 = vmatpush1.bf16.msra.mxu0 %v832
  %849 = vmatprep.subr.bf16.mxu0 0
  %850 = vmatpush1.bf16.msra.mxu0 %v831
  %851 = vmatprep.subr.bf16.mxu0 0
  %852 = vmatpush1.bf16.msra.mxu0 %v830
  %853 = vmatprep.subr.bf16.mxu0 0
  %854 = vmatpush1.bf16.msra.mxu0 %v829
  %855 = vmatprep.subr.bf16.mxu0 0
  %856 = vmatpush1.bf16.msra.mxu0 %v828
  %857 = vmatprep.subr.bf16.mxu0 0
  %858 = vmatpush1.bf16.msra.mxu0 %v827
  %859 = vmatprep.subr.bf16.mxu0 0
  %860 = vmatpush2.bf16.msra.mxu0 0
  %861 = vmatprep.subr.bf16.mxu0 0
  %862 = vmatpush2.bf16.msra.mxu0 0
  %863 = vmatprep.subr.bf16.mxu0 0
  %864 = vmatpush2.bf16.msra.mxu0 0
  %865 = vmatprep.subr.bf16.mxu0 0
  %866 = vmatpush2.bf16.msra.mxu0 0
  %867 = vmatprep.subr.bf16.mxu0 0
  %868 = vmatpush2.bf16.msra.mxu0 0
  %869 = vmatprep.subr.bf16.mxu0 0
  %870 = vmatpush2.bf16.msra.mxu0 0
  %871 = vmatprep.subr.bf16.mxu0 0
  %872 = vmatpush2.bf16.msra.mxu0 0
  %873 = vmatprep.subr.bf16.mxu0 0
  %874 = vmatpush2.bf16.msra.mxu0 0
  %875 = vmatprep.mubr.bf16.mxu0 0
  %876 = vmatmul.mubr.bf16.gmra.mxu0 %v777
  %v877 = vpop.f32.mrf.mxu0
  %v878 = vadd.f32 0.0, %v877
  %v879 = vpop.f32.mrf.mxu0
  %v880 = vpop.f32.mrf.mxu0
  %v881 = vadd.f32 0.0, %v880
  %v882 = vpop.f32.mrf.mxu0
  %883 = vmatprep.mubr.bf16.mxu0 0
  %884 = vmatmul.mubr.bf16.gmra.mxu0 %v778
  %v885 = vpop.f32.mrf.mxu0
  %v886 = vadd.f32 0.0, %v885
  %v887 = vpop.f32.mrf.mxu0
  %v888 = vpop.f32.mrf.mxu0
  %v889 = vadd.f32 0.0, %v888
  %v890 = vpop.f32.mrf.mxu0
  %891 = vdwg.mxu0
  %v892 = vadd.f32 %v763, %v878
  %v893 = vadd.f32 %v766, %v881
  %v894 = vadd.f32 %v771, %v886
  %v895 = vadd.f32 %v774, %v889
  %v896 = vld [vmem:[%s5] sm:$0x1]
  %v898 = vlaneseq
  %v899 = vshrl.u32 %v898, 7
  %v900 = vsub.s32 0, %v899
  %v901 = vrot.slane %v896, %v900
  %v903 = vmul.f32 %v892, %v901
  %v904 = vmul.f32 %v893, %v901
  %v905 = vmul.f32 %v894, %v901
  %v906 = vmul.f32 %v895, %v901
  %v907 = vld [vmem:[%s6] sm:$0x1]
  %v909 = vlaneseq
  %v910 = vshrl.u32 %v909, 7
  %v911 = vsub.s32 0, %v910
  %v912 = vrot.slane %v907, %v911
  %v914 = vadd.f32 %v903, %v912
  %v915 = vadd.f32 %v904, %v912
  %v916 = vadd.f32 %v905, %v912
  %v917 = vadd.f32 %v906, %v912
  %v918 = vadd.f32 %v914, %v31
  %v919 = vadd.f32 %v915, %v32
  %v920 = vadd.f32 %v916, %v33
  %v921 = vadd.f32 %v917, %v34
  %v922 = vmax.f32 %v918, 0.0
  %v923 = vmax.f32 %v919, 0.0
  %v924 = vmax.f32 %v920, 0.0
  %v925 = vmax.f32 %v921, 0.0
  %v926 = vpack.c.bf16 %v923, %v922
  %v927 = vpack.c.bf16 %v925, %v924
  %v930 = vunpack.c.l.b16 %v926
  %v931 = vunpack.c.h.b16 %v926
  %v932 = vunpack.c.l.b16 %v927
  %v933 = vunpack.c.h.b16 %v927
  %v934 = vpack.c.b16 %v930, %v930
  %v935 = vpack.c.b16 %v931, %v931
  %v936 = vpack.c.b16 %v932, %v932
  %v937 = vpack.c.b16 %v933, %v933
  %942 = vst [vmem:[%s7] sm:$0xf] %v934
  %943 = vst [vmem:[%s7 + $0x4] sm:$0xf] %v935
  %944 = vst [vmem:[%s7 + $0x8] sm:$0xf] %v936
  %945 = vst [vmem:[%s7 + $0xc] sm:$0xf] %v937
  // Predicated region
  $region30: #{basic_block_1d.1} parent=0 // pred_check
    _
  $region31: #{basic_block_1d.1} parent=0 // pred_check_branch
    %947 = sbr.rel (0) target = $region33
  $region32: #{basic_block_1d.1} parent=0 // pred_region
    _
  $region33: #{basic_block_1d.1} parent=0 // pred_fallthru
    _
  // Predicated region
  $region34: #{basic_block_1d.1} parent=0 // pred_check
    _
  $region35: #{basic_block_1d.1} parent=0 // pred_check_branch
    %949 = sbr.rel (0) target = $region37
  $region36: #{basic_block_1d.1} parent=0 // pred_region
    _
  $region37: #{basic_block_1d.1} parent=0 // pred_fallthru
    _

</llo_original>
